<compile_context>
chip_gen: v6e
topology: v6e:2x2x1
jax: 0.10.0
libtpu: 0.0.40
codegen_flags: <defaults>
</compile_context>

<pallas_src>
import functools

import jax
import jax.numpy as jnp
from jax.experimental import pallas as pl
from jax.experimental.pallas import tpu as pltpu


def _vq_kernel(x_ref, embt_ref, embm2_ref, e2_ref, iota_ref,
               q_ref, idx_ref, counts_ref, sse_ref, *, valid_m=None):
    x = x_ref[...].astype(jnp.float32)        # (D, TM)
    emb_t = embt_ref[...]                     # (D, K) f32 codebook, transposed
    emb_m2 = embm2_ref[...]                   # (K, D) f32, == -2 * codebook
    e2 = e2_ref[...]                          # (K, 1)  ||e||^2 (precomputed)
    iota_k = iota_ref[...]                    # (K, 1)  [0..K-1] as f32
    k = emb_m2.shape[0]
    tm = x.shape[1]

    # distances (K, TM): ||x||^2 + ||e||^2 - 2 e.x   (torch formula; the -2 is
    # folded into the codebook operand — exact power-of-two scaling).
    x2 = jnp.sum(x * x, axis=0, keepdims=True)                        # (1, TM)
    cross_m2 = jax.lax.dot_general(
        emb_m2, x, (((1,), (0,)), ((), ())),
        preferred_element_type=jnp.float32)                           # (K, TM)
    dist = x2 + e2 + cross_m2                                         # (K, TM)

    # first-occurrence argmin over the codebook (sublane) axis, like torch.
    min_d = jnp.min(dist, axis=0, keepdims=True)                      # (1, TM)
    first = jnp.min(jnp.where(dist == min_d, iota_k, float(k)),
                    axis=0, keepdims=True)                            # (1, TM)
    # TODO(synk): all-NaN rows give first == K (torch.argmin on NaN is
    # implementation defined); encodings for such rows come out all-zero.
    idx_ref[...] = first.astype(jnp.int32)                            # lane-dense

    enc = (iota_k == first).astype(jnp.float32)                       # (K, TM)
    if valid_m is not None:   # static: only traced when M % tile_m != 0
        col = jax.lax.broadcasted_iota(jnp.int32, (1, tm), 1)
        valid = (pl.program_id(0) * tm + col) < valid_m
        enc = jnp.where(valid, enc, 0.0)

    # quantized rows (transposed): emb^T @ enc -> (D, TM), lane-dense store.
    quant = jax.lax.dot_general(
        emb_t, enc, (((1,), (0,)), ((), ())),
        preferred_element_type=jnp.float32)                           # (D, TM)
    q_ref[...] = quant.astype(q_ref.dtype)

    # per-tile partial codebook usage and sum of squared errors.
    counts_ref[...] = jnp.sum(enc, axis=1, keepdims=True)             # (K, 1)
    diff = quant - x                                                  # (D, TM)
    sse = jnp.sum(jnp.sum(diff * diff, axis=0, keepdims=True),
                  axis=1, keepdims=True)                              # (1, 1)
    sse_ref[...] = jnp.broadcast_to(sse, (1, 128))


def _round_up(x, n):
    return -(-x // n) * n


def _vmem_limits():
    """Generation-aware VMEM budget (tile selection) and scoped limit."""
    try:
        phys = int(pltpu.get_tpu_info().vmem_capacity_bytes)
    except Exception:                        # unknown chip / interpret mode
        phys = 64 * 1024 * 1024              # assume v7x (most restrictive)
    phys = max(phys, 32 * 1024 * 1024)
    limit = (phys * 3) // 4                  # 48 MiB on v7x, 96 MiB on v5e/v6e
    budget = limit // 2                      # 24 MiB on v7x, 48 MiB on v5e/v6e
    return budget, limit


def _pick_tile_m(m, k, d, budget_bytes, bufs_x=3):
    """Largest lane-dense (multiple of 128) M tile that fits the VMEM budget."""
    kp = _round_up(max(k, 8), 8)
    dp = _round_up(max(d, 8), 8)

    def est(tm):
        io = bufs_x * dp * tm * 4                     # x tile (up to 3 buffers)
        io += 2 * dp * tm * 4                         # quantized tile
        io += 2 * 8 * tm * 4                          # index row
        io += 2 * (kp + 8) * 128 * 4                  # counts + sse blocks
        io += (kp * _round_up(max(d, 1), 128)         # -2*codebook (K, D)
               + dp * _round_up(max(k, 1), 128)) * 4  # codebook^T  (D, K)
        io += 2 * kp * 128 * 4                        # ||e||^2 + iota columns
        work = 6 * kp * tm * 4 + 4 * dp * tm * 4      # dist/enc/cross + quant/diff
        return io + work

    cap = max(_round_up(m, 128), 128)
    if cap <= 8192 and est(cap) <= budget_bytes:
        return cap
    for cand in (8192, 4096, 2048, 1024, 512, 256, 128):
        if cand <= cap and est(cand) <= budget_bytes:
            return cand
    return 128


@functools.partial(jax.jit, static_argnames=("commitment_cost", "tile_m"))
def vector_quantizer_forward(x_nchw, embedding, commitment_cost=0.25,
                             tile_m=None):
    """Forward pass of VectorQuantizer.

    Args:
      x_nchw:    (B, C, H, W) float32, C == embedding_dim
      embedding: (num_embeddings, embedding_dim) codebook

    Returns:
      loss (scalar), quantized (B, C, H, W), perplexity (scalar),
      encoding_indices (B*H*W, 1) int32
    """
    b, c, h, w = x_nchw.shape
    k, d = embedding.shape
    assert c == d, "channel dim must equal embedding_dim"

    m = b * h * w
    budget, vmem_limit = _vmem_limits()
    if tile_m is None:
        tile_m = _pick_tile_m(m, k, d, budget)
    num_tiles = -(-m // tile_m)
    m_pad = num_tiles * tile_m

    # (B,C,H,W) -> (C, B*H*W): same row order as torch's NHWC flatten, but with
    # D on sublanes and M on the lane axis (lane-dense loads and stores).
    x_t = jnp.transpose(x_nchw, (1, 0, 2, 3)).reshape(d, m)
    if m_pad != m:
        x_t = jnp.pad(x_t, ((0, 0), (0, m_pad - m)))

    # Loop-invariant hoists: cast, transpose, -2 scale, ||e||^2, argmin iota.
    emb_f32 = embedding.astype(jnp.float32)
    emb_t = emb_f32.T                                         # (D, K)
    emb_m2 = emb_f32 * (-2.0)                                 # (K, D)
    e2 = jnp.sum(emb_f32 * emb_f32, axis=1, keepdims=True)    # (K, 1)
    iota_k = jnp.arange(k, dtype=jnp.float32)[:, None]        # (K, 1)

    if num_tiles >= 3:   # deeper buffering only when the pipeline is long enough
        x_spec = pl.BlockSpec((d, tile_m), lambda i: (0, i),
                              pipeline_mode=pl.Buffered(3))
    else:
        x_spec = pl.BlockSpec((d, tile_m), lambda i: (0, i))

    def resident(shape):
        return pl.BlockSpec(shape, lambda i: (0, 0), pipeline_mode=pl.Buffered(1))

    kernel = functools.partial(_vq_kernel,
                               valid_m=(m if m_pad != m else None))

    q_t, idx3, counts3, sse3 = pl.pallas_call(
        kernel,
        out_shape=(
            jax.ShapeDtypeStruct((d, m_pad), x_nchw.dtype),           # quantized^T
            jax.ShapeDtypeStruct((num_tiles, 1, tile_m), jnp.int32),  # indices
            jax.ShapeDtypeStruct((num_tiles, k, 1), jnp.float32),     # counts
            jax.ShapeDtypeStruct((num_tiles, 1, 128), jnp.float32),   # sse
        ),
        grid_spec=pltpu.PrefetchScalarGridSpec(
            num_scalar_prefetch=0,
            grid=(num_tiles,),
            in_specs=[
                x_spec,                      # x^T tile      (D, TM)
                resident((d, k)),            # codebook^T    (D, K)
                resident((k, d)),            # -2 * codebook (K, D)
                resident((k, 1)),            # ||e||^2       (K, 1)
                resident((k, 1)),            # iota          (K, 1)
            ],
            out_specs=[
                pl.BlockSpec((d, tile_m), lambda i: (0, i)),
                pl.BlockSpec((None, 1, tile_m), lambda i: (i, 0, 0)),
                pl.BlockSpec((None, k, 1), lambda i: (i, 0, 0)),
                pl.BlockSpec((None, 1, 128), lambda i: (i, 0, 0)),
            ],
        ),
        compiler_params=pltpu.CompilerParams(
            dimension_semantics=("parallel",),
            vmem_limit_bytes=vmem_limit),
    )(x_t, emb_t, emb_m2, e2, iota_k)

    # Scalar epilogue (glue): reduce per-tile partials.
    counts = jnp.sum(counts3[:, :, 0], axis=0)          # (K,)
    sse = jnp.sum(sse3[:, 0, 0])                        # scalar

    mse = sse / (m * d)
    # q_latent_loss and e_latent_loss have identical forward values:
    # loss = q_latent_loss + commitment_cost * e_latent_loss
    loss = (1.0 + commitment_cost) * mse

    avg_probs = counts / m
    perplexity = jnp.exp(-jnp.sum(avg_probs * jnp.log(avg_probs + 1e-10)))

    # (C, M) -> NCHW; padded columns (if any) are dropped first.
    if m_pad != m:
        q_t = q_t[:, :m]
    quantized = jnp.transpose(q_t.reshape(d, b, h, w), (1, 0, 2, 3))
    idx = idx3.reshape(-1)[:m][:, None]

    # TODO(synk): straight-through estimator (inputs + (quantized-inputs).detach())
    # is a backward-pass concern; the forward value equals `quantized`.
    return loss, quantized, perplexity, idx


if __name__ == "__main__":
    # Module hyper-params (synthetic, deterministic init — no checkpoint load).
    num_embeddings = 8
    embedding_dim = 4
    commitment_cost = 0.25

    key = jax.random.PRNGKey(0)
    k_x, k_e = jax.random.split(key)

    # input: (B=2, C=embedding_dim=4, H=16, W=16) in NCHW like the torch module
    x = jax.random.normal(k_x, (2, embedding_dim, 16, 16), dtype=jnp.float32)

    # nn.Embedding weight, uniform(-1/K, 1/K) init (gaussion_prior=False branch)
    embedding = jax.random.uniform(
        k_e, (num_embeddings, embedding_dim), dtype=jnp.float32,
        minval=-1.0 / num_embeddings, maxval=1.0 / num_embeddings)

    loss, quantized, perplexity, indices = vector_quantizer_forward(
        x, embedding, commitment_cost=commitment_cost)
    jax.block_until_ready((loss, quantized, perplexity, indices))

    # lightweight sanity check against a pure-JAX reference (f32 matmul so the
    # reference distances match the kernel's f32 MXU path near ties)
    x_flat = jnp.transpose(x, (0, 2, 3, 1)).reshape(-1, embedding_dim)
    cross = jnp.matmul(x_flat, embedding.T, precision=jax.lax.Precision.HIGHEST)
    d_ref = (jnp.sum(x_flat ** 2, 1, keepdims=True)
             + jnp.sum(embedding ** 2, 1) - 2.0 * cross)
    idx_ref = jnp.argmin(d_ref, axis=1)
    q_ref = embedding[idx_ref].reshape(2, 16, 16, embedding_dim).transpose(0, 3, 1, 2)
    assert indices.shape == (x_flat.shape[0], 1)
    assert jnp.array_equal(indices[:, 0], idx_ref.astype(jnp.int32))
    assert jnp.allclose(quantized, q_ref, atol=1e-6)
    mse_ref = jnp.mean((q_ref - x) ** 2)
    assert jnp.allclose(loss, (1.0 + commitment_cost) * mse_ref, atol=1e-5)
    enc_ref = jax.nn.one_hot(idx_ref, num_embeddings)
    avg_ref = enc_ref.mean(0)
    perp_ref = jnp.exp(-jnp.sum(avg_ref * jnp.log(avg_ref + 1e-10)))
    assert jnp.allclose(perplexity, perp_ref, atol=1e-5)

    print("KERNEL_OK")
</pallas_src>

<mosaic_0001>
module attributes {stable_mosaic.version = 11 : i64} {
  func.func @_vq_kernel(%arg0: i32, %arg1: memref<4x512xf32, #tpu.memory_space<vmem>>, %arg2: memref<4x8xf32, #tpu.memory_space<vmem>>, %arg3: memref<8x4xf32, #tpu.memory_space<vmem>>, %arg4: memref<8x1xf32, #tpu.memory_space<vmem>>, %arg5: memref<8x1xf32, #tpu.memory_space<vmem>>, %arg6: memref<4x512xf32, #tpu.memory_space<vmem>>, %arg7: memref<1x1x512xi32, #tpu.memory_space<vmem>>, %arg8: memref<1x8x1xf32, #tpu.memory_space<vmem>>, %arg9: memref<1x1x128xf32, #tpu.memory_space<vmem>>) attributes {dimension_semantics = [#tpu.dimension_semantics<parallel>], iteration_bounds = array<i64: 1>, scalar_prefetch = 0 : i64, scratch_operands = 0 : i64, tpu.core_type = #tpu.core_type<tc>, window_params = [{transform_indices = @transform_0, window_bounds = array<i64: 4, 512>}, {pipeline_mode = #tpu.pipeline_mode<synchronous>, transform_indices = @transform_1, window_bounds = array<i64: 4, 8>}, {pipeline_mode = #tpu.pipeline_mode<synchronous>, transform_indices = @transform_2, window_bounds = array<i64: 8, 4>}, {pipeline_mode = #tpu.pipeline_mode<synchronous>, transform_indices = @transform_3, window_bounds = array<i64: 8, 1>}, {pipeline_mode = #tpu.pipeline_mode<synchronous>, transform_indices = @transform_4, window_bounds = array<i64: 8, 1>}, {transform_indices = @transform_5, window_bounds = array<i64: 4, 512>}, {transform_indices = @transform_6, window_bounds = array<i64: 1, 1, 512>}, {transform_indices = @transform_7, window_bounds = array<i64: 1, 8, 1>}, {transform_indices = @transform_8, window_bounds = array<i64: 1, 1, 128>}]} {
    %c0 = arith.constant 0 : index
    %c0_0 = arith.constant 0 : index
    %0 = vector.load %arg1[%c0, %c0_0] : memref<4x512xf32, #tpu.memory_space<vmem>>, vector<4x512xf32>
    %c0_1 = arith.constant 0 : index
    %c0_2 = arith.constant 0 : index
    %1 = vector.load %arg2[%c0_1, %c0_2] : memref<4x8xf32, #tpu.memory_space<vmem>>, vector<4x8xf32>
    %c0_3 = arith.constant 0 : index
    %c0_4 = arith.constant 0 : index
    %2 = vector.load %arg3[%c0_3, %c0_4] : memref<8x4xf32, #tpu.memory_space<vmem>>, vector<8x4xf32>
    %c0_5 = arith.constant 0 : index
    %c0_6 = arith.constant 0 : index
    %3 = vector.load %arg4[%c0_5, %c0_6] : memref<8x1xf32, #tpu.memory_space<vmem>>, vector<8x1xf32>
    %c0_7 = arith.constant 0 : index
    %c0_8 = arith.constant 0 : index
    %4 = vector.load %arg5[%c0_7, %c0_8] : memref<8x1xf32, #tpu.memory_space<vmem>>, vector<8x1xf32>
    %5 = arith.mulf %0, %0 : vector<4x512xf32>
    %cst = arith.constant dense<0.000000e+00> : vector<512xf32>
    %6 = vector.multi_reduction <add>, %5, %cst [0] : vector<4x512xf32> to vector<512xf32>
    %7 = vector.shape_cast %6 : vector<512xf32> to vector<1x512xf32>
    %cst_9 = arith.constant dense<0.000000e+00> : vector<8x512xf32>
    %8 = tpu.matmul %2, %0, %cst_9 {dimension_numbers = #tpu.dot_dimension_numbers<[1], [0], [0], [1], [0, 0, 1, 1], [], []>} : vector<8x4xf32>, vector<4x512xf32>, vector<8x512xf32> -> vector<8x512xf32>
    %9 = vector.broadcast %7 : vector<1x512xf32> to vector<8x512xf32>
    %10 = vector.broadcast %3 : vector<8x1xf32> to vector<8x512xf32>
    %11 = arith.addf %9, %10 : vector<8x512xf32>
    %12 = arith.addf %11, %8 : vector<8x512xf32>
    %cst_10 = arith.constant dense<0x7F800000> : vector<512xf32>
    %13 = vector.multi_reduction <minimumf>, %12, %cst_10 [0] : vector<8x512xf32> to vector<512xf32>
    %14 = vector.shape_cast %13 : vector<512xf32> to vector<1x512xf32>
    %15 = vector.broadcast %14 : vector<1x512xf32> to vector<8x512xf32>
    %16 = arith.cmpf oeq, %12, %15 : vector<8x512xf32>
    %cst_11 = arith.constant 8.000000e+00 : f32
    %17 = vector.shape_cast %4 : vector<8x1xf32> to vector<8x1xf32>
    %18 = vector.broadcast %17 : vector<8x1xf32> to vector<8x512xf32>
    %19 = vector.broadcast %cst_11 : f32 to vector<8x512xf32>
    %20 = arith.select %16, %18, %19 : vector<8x512xi1>, vector<8x512xf32>
    %cst_12 = arith.constant dense<0x7F800000> : vector<512xf32>
    %21 = vector.multi_reduction <minimumf>, %20, %cst_12 [0] : vector<8x512xf32> to vector<512xf32>
    %22 = vector.shape_cast %21 : vector<512xf32> to vector<1x512xf32>
    %23 = arith.fptosi %22 : vector<1x512xf32> to vector<1x512xi32>
    %c0_13 = arith.constant 0 : index
    %c0_14 = arith.constant 0 : index
    %c0_15 = arith.constant 0 : index
    %24 = vector.load %arg7[%c0_13, %c0_14, %c0_15] : memref<1x1x512xi32, #tpu.memory_space<vmem>>, vector<1x1x512xi32>
    %25 = vector.shape_cast %24 : vector<1x1x512xi32> to vector<1x512xi32>
    %26 = vector.shape_cast %23 : vector<1x512xi32> to vector<1x1x512xi32>
    tpu.vector_store %arg7[%c0_13, %c0_14, %c0_15], %26 {strides = array<i32>} : memref<1x1x512xi32, #tpu.memory_space<vmem>>, vector<1x1x512xi32>,
    %27 = vector.broadcast %4 : vector<8x1xf32> to vector<8x512xf32>
    %28 = vector.broadcast %22 : vector<1x512xf32> to vector<8x512xf32>
    %29 = arith.cmpf oeq, %27, %28 : vector<8x512xf32>
    %30 = arith.extui %29 : vector<8x512xi1> to vector<8x512xi32>
    %31 = arith.sitofp %30 : vector<8x512xi32> to vector<8x512xf32>
    %cst_16 = arith.constant dense<0.000000e+00> : vector<4x512xf32>
    %32 = tpu.matmul %1, %31, %cst_16 {dimension_numbers = #tpu.dot_dimension_numbers<[1], [0], [0], [1], [0, 0, 1, 1], [], []>} : vector<4x8xf32>, vector<8x512xf32>, vector<4x512xf32> -> vector<4x512xf32>
    %c0_17 = arith.constant 0 : index
    %c0_18 = arith.constant 0 : index
    %33 = vector.load %arg6[%c0_17, %c0_18] : memref<4x512xf32, #tpu.memory_space<vmem>>, vector<4x512xf32>
    tpu.vector_store %arg6[%c0_17, %c0_18], %32 {strides = array<i32>} : memref<4x512xf32, #tpu.memory_space<vmem>>, vector<4x512xf32>,
    %cst_19 = arith.constant dense<0.000000e+00> : vector<8xf32>
    %34 = vector.multi_reduction <add>, %31, %cst_19 [1] : vector<8x512xf32> to vector<8xf32>
    %35 = vector.shape_cast %34 : vector<8xf32> to vector<8x1xf32>
    %c0_20 = arith.constant 0 : index
    %c0_21 = arith.constant 0 : index
    %c0_22 = arith.constant 0 : index
    %36 = vector.load %arg8[%c0_20, %c0_21, %c0_22] : memref<1x8x1xf32, #tpu.memory_space<vmem>>, vector<1x8x1xf32>
    %37 = vector.shape_cast %36 : vector<1x8x1xf32> to vector<8x1xf32>
    %38 = vector.shape_cast %35 : vector<8x1xf32> to vector<1x8x1xf32>
    tpu.vector_store %arg8[%c0_20, %c0_21, %c0_22], %38 {strides = array<i32>} : memref<1x8x1xf32, #tpu.memory_space<vmem>>, vector<1x8x1xf32>,
    %39 = arith.subf %32, %0 : vector<4x512xf32>
    %40 = arith.mulf %39, %39 : vector<4x512xf32>
    %cst_23 = arith.constant dense<0.000000e+00> : vector<512xf32>
    %41 = vector.multi_reduction <add>, %40, %cst_23 [0] : vector<4x512xf32> to vector<512xf32>
    %42 = vector.shape_cast %41 : vector<512xf32> to vector<1x512xf32>
    %cst_24 = arith.constant dense<0.000000e+00> : vector<1xf32>
    %43 = vector.multi_reduction <add>, %42, %cst_24 [1] : vector<1x512xf32> to vector<1xf32>
    %44 = vector.shape_cast %43 : vector<1xf32> to vector<1x1xf32>
    %45 = vector.shape_cast %44 : vector<1x1xf32> to vector<1x1xf32>
    %46 = vector.broadcast %45 : vector<1x1xf32> to vector<1x128xf32>
    %c0_25 = arith.constant 0 : index
    %c0_26 = arith.constant 0 : index
    %c0_27 = arith.constant 0 : index
    %47 = vector.load %arg9[%c0_25, %c0_26, %c0_27] : memref<1x1x128xf32, #tpu.memory_space<vmem>>, vector<1x1x128xf32>
    %48 = vector.shape_cast %47 : vector<1x1x128xf32> to vector<1x128xf32>
    %49 = vector.shape_cast %46 : vector<1x128xf32> to vector<1x1x128xf32>
    tpu.vector_store %arg9[%c0_25, %c0_26, %c0_27], %49 {strides = array<i32>} : memref<1x1x128xf32, #tpu.memory_space<vmem>>, vector<1x1x128xf32>,
    return
  }
  func.func @transform_0(%arg0: i32) -> (i32, i32) {
    %c0_i32 = arith.constant 0 : i32
    %c0_i32_0 = arith.constant 0 : i32
    return %c0_i32, %arg0 : i32, i32
  }
  func.func @transform_1(%arg0: i32) -> (i32, i32) {
    %c0_i32 = arith.constant 0 : i32
    %c0_i32_0 = arith.constant 0 : i32
    %c0_i32_1 = arith.constant 0 : i32
    return %c0_i32, %c0_i32_0 : i32, i32
  }
  func.func @transform_2(%arg0: i32) -> (i32, i32) {
    %c0_i32 = arith.constant 0 : i32
    %c0_i32_0 = arith.constant 0 : i32
    %c0_i32_1 = arith.constant 0 : i32
    return %c0_i32, %c0_i32_0 : i32, i32
  }
  func.func @transform_3(%arg0: i32) -> (i32, i32) {
    %c0_i32 = arith.constant 0 : i32
    %c0_i32_0 = arith.constant 0 : i32
    %c0_i32_1 = arith.constant 0 : i32
    return %c0_i32, %c0_i32_0 : i32, i32
  }
  func.func @transform_4(%arg0: i32) -> (i32, i32) {
    %c0_i32 = arith.constant 0 : i32
    %c0_i32_0 = arith.constant 0 : i32
    %c0_i32_1 = arith.constant 0 : i32
    return %c0_i32, %c0_i32_0 : i32, i32
  }
  func.func @transform_5(%arg0: i32) -> (i32, i32) {
    %c0_i32 = arith.constant 0 : i32
    %c0_i32_0 = arith.constant 0 : i32
    return %c0_i32, %arg0 : i32, i32
  }
  func.func @transform_6(%arg0: i32) -> (i32, i32, i32) {
    %c0_i32 = arith.constant 0 : i32
    %c0_i32_0 = arith.constant 0 : i32
    %c0_i32_1 = arith.constant 0 : i32
    return %arg0, %c0_i32, %c0_i32_0 : i32, i32, i32
  }
  func.func @transform_7(%arg0: i32) -> (i32, i32, i32) {
    %c0_i32 = arith.constant 0 : i32
    %c0_i32_0 = arith.constant 0 : i32
    %c0_i32_1 = arith.constant 0 : i32
    return %arg0, %c0_i32, %c0_i32_0 : i32, i32, i32
  }
  func.func @transform_8(%arg0: i32) -> (i32, i32, i32) {
    %c0_i32 = arith.constant 0 : i32
    %c0_i32_0 = arith.constant 0 : i32
    %c0_i32_1 = arith.constant 0 : i32
    return %arg0, %c0_i32, %c0_i32_0 : i32, i32, i32
  }
}

</mosaic_0001>

<llo_original>
// kernel: vector_quantizer_forward.1
$region0: #{vector_quantizer_forward.1}
  #allocation0 [shape = 'u32[]', space=smem, size = 0x4, offset = 0x4, fixed_abs, tag = 'smem constant byte address 0x4 - core index']
  #allocation1 [shape = 'u32[144,128]{1,0:T(1,128)}', space=vmem, size = 0x12000, scoped, tag = 'internal scratch']
  %s0 = inlined_call_operand.vmem [shape: f32[4,512], index: 0, kind: input, shape index: {}]
  %s1 = inlined_call_operand.vmem [shape: f32[4,8], index: 1, kind: input, shape index: {}]
  %s2 = inlined_call_operand.vmem [shape: f32[8,4], index: 2, kind: input, shape index: {}]
  %s3 = inlined_call_operand.vmem [shape: f32[8,1], index: 3, kind: input, shape index: {}]
  %s4 = inlined_call_operand.vmem [shape: f32[8,1], index: 4, kind: input, shape index: {}]
  %s5 = inlined_call_operand.vmem [shape: f32[4,512], index: 5, kind: output, shape index: {0}]
  %s6 = inlined_call_operand.hbm [shape: s32[1,1,512], index: 6, kind: output, shape index: {1}]
  %s7 = inlined_call_operand.vmem [shape: f32[1,8,1], index: 7, kind: output, shape index: {2}]
  %s8 = inlined_call_operand.vmem [shape: f32[1,1,128], index: 8, kind: output, shape index: {3}]
  %9 = xla_tuple %s5, %s6, %s7, %s8
  %s10 = sld [smem:[#allocation0]]
  $region54: #{vector_quantizer_forward.1} parent=0
    _
  %s12 = ssub.s32 1, %s10
  %s13 = scalar_select 0, %s12, %s10
  $region1: #{vector_quantizer_forward.1} parent=0
    #allocation2 [shape = 'u8[2048]{0}', space=vmem, size = 0x800, scoped, tag = 'output window, operand 1, single buffered']
    #allocation3 [shape = 's32[1]{0}', space=sflag, size = 0x4, scoped, tag = 'scoped memory for vector_quantizer_forward.1']
    %14 = vsyncpa [#allocation3], 0
    // Predicated region
    $region2: #{vector_quantizer_forward.1} parent=1 // pred_check
      _
    $region3: #{vector_quantizer_forward.1} parent=1 // pred_check_branch
      %16 = sbr.rel (0) target = $region5
    $region4: #{vector_quantizer_forward.1} parent=1 // pred_region
      _
    $region5: #{vector_quantizer_forward.1} parent=1 // pred_fallthru
      _
    // Predicated region
    $region6: #{vector_quantizer_forward.1} parent=1 // pred_check
      _
    $region7: #{vector_quantizer_forward.1} parent=1 // pred_check_branch
      %18 = sbr.rel (0) target = $region9
    $region8: #{vector_quantizer_forward.1} parent=1 // pred_region
      _
    $region9: #{vector_quantizer_forward.1} parent=1 // pred_fallthru
      _
    // Predicated region
    $region10: #{vector_quantizer_forward.1} parent=1 // pred_check
      _
    $region11: #{vector_quantizer_forward.1} parent=1 // pred_check_branch
      %20 = sbr.rel (0) target = $region13
    $region12: #{vector_quantizer_forward.1} parent=1 // pred_region
      _
    $region13: #{vector_quantizer_forward.1} parent=1 // pred_fallthru
      _
    // Predicated region
    $region14: #{vector_quantizer_forward.1} parent=1 // pred_check
      _
    $region15: #{vector_quantizer_forward.1} parent=1 // pred_check_branch
      %22 = sbr.rel (0) target = $region17
    $region16: #{vector_quantizer_forward.1} parent=1 // pred_region
      _
    $region17: #{vector_quantizer_forward.1} parent=1 // pred_fallthru
      _
    // Predicated region
    $region18: #{vector_quantizer_forward.1} parent=1 // pred_check
      _
    $region19: #{vector_quantizer_forward.1} parent=1 // pred_check_branch
      %24 = sbr.rel (0) target = $region21
    $region20: #{vector_quantizer_forward.1} parent=1 // pred_region
      _
    $region21: #{vector_quantizer_forward.1} parent=1 // pred_fallthru
      _
    %v25 = vld [vmem:[%s0] sm:$0xff]
    %v26 = vld [vmem:[%s0 + $0x8] sm:$0xff]
    %v27 = vld [vmem:[%s1] sm:$0xf]
    %v28 = vld [vmem:[%s2] sm:$0xff]
    %v29 = vld [vmem:[%s3] sm:$0xff]
    %v30 = vld [vmem:[%s4] sm:$0xff]
    %v31 = vmul.f32 %v25, %v25
    %v32 = vmul.f32 %v26, %v26
    %v35 = vcombine.high %v31, %v31
    %v36 = vcombine.high %v32, %v32
    %vm39 = vcmask 1043456
    %v40 = vsel %vm39, %v31, 0.0
    %v41 = vrot.slane %v40, 4
    %v42 = vadd.f32 %v40, %v41
    %v43 = vrot.slane %v42, 2
    %v44 = vadd.f32 %v42, %v43
    %v45 = vrot.slane %v44, 1
    %v46 = vadd.f32 %v44, %v45
    %v47 = vsel %vm39, %v35, 0.0
    %v48 = vrot.slane %v47, 4
    %v49 = vadd.f32 %v47, %v48
    %v50 = vrot.slane %v49, 2
    %v51 = vadd.f32 %v49, %v50
    %v52 = vrot.slane %v51, 1
    %v53 = vadd.f32 %v51, %v52
    %v54 = vsel %vm39, %v32, 0.0
    %v55 = vrot.slane %v54, 4
    %v56 = vadd.f32 %v54, %v55
    %v57 = vrot.slane %v56, 2
    %v58 = vadd.f32 %v56, %v57
    %v59 = vrot.slane %v58, 1
    %v60 = vadd.f32 %v58, %v59
    %v61 = vsel %vm39, %v36, 0.0
    %v62 = vrot.slane %v61, 4
    %v63 = vadd.f32 %v61, %v62
    %v64 = vrot.slane %v63, 2
    %v65 = vadd.f32 %v63, %v64
    %v66 = vrot.slane %v65, 1
    %v67 = vadd.f32 %v65, %v66
    %v70 = vcombine.high %v25, %v25
    %v71 = vcombine.high %v26, %v26
    %vm72 = vcmask 31744
    %v74 = vsel %vm72, %v28, 0
    %v76 = vsel %vm39, %v25, 0
    %v78 = vsel %vm39, %v70, 0
    %v80 = vsel %vm39, %v26, 0
    %v82 = vsel %vm39, %v71, 0
    %84 = vmatprep.subr.mxu0 0.0
    %85 = vmatpush1.msra.mxu0 0.0
    %86 = vmatprep.subr.mxu0 0.0
    %87 = vmatpush1.msra.mxu0 0.0
    %88 = vmatprep.subr.mxu0 0.0
    %89 = vmatpush1.msra.mxu0 0.0
    %90 = vmatprep.subr.mxu0 0.0
    %91 = vmatpush1.msra.mxu0 0.0
    %92 = vmatprep.subr.mxu0 0.0
    %93 = vmatpush1.msra.mxu0 0.0
    %94 = vmatprep.subr.mxu0 0.0
    %95 = vmatpush1.msra.mxu0 0.0
    %96 = vmatprep.subr.mxu0 0.0
    %97 = vmatpush1.msra.mxu0 0.0
    %98 = vmatprep.subr.mxu0 0.0
    %99 = vmatpush1.msra.mxu0 0.0
    %100 = vmatprep.subr.mxu0 0.0
    %101 = vmatpush1.msra.mxu0 0.0
    %102 = vmatprep.subr.mxu0 0.0
    %103 = vmatpush1.msra.mxu0 0.0
    %104 = vmatprep.subr.mxu0 0.0
    %105 = vmatpush1.msra.mxu0 0.0
    %106 = vmatprep.subr.mxu0 0.0
    %107 = vmatpush1.msra.mxu0 0.0
    %108 = vmatprep.subr.mxu0 0.0
    %109 = vmatpush1.msra.mxu0 0.0
    %110 = vmatprep.subr.mxu0 0.0
    %111 = vmatpush1.msra.mxu0 0.0
    %112 = vmatprep.subr.mxu0 0.0
    %113 = vmatpush1.msra.mxu0 0.0
    %114 = vmatprep.subr.mxu0 %v78
    %115 = vmatpush1.msra.mxu0 %v76
    %116 = vmatprep.subr.mxu0 0.0
    %117 = vmatpush2.msra.mxu0 0.0
    %118 = vmatprep.subr.mxu0 0.0
    %119 = vmatpush2.msra.mxu0 0.0
    %120 = vmatprep.subr.mxu0 0.0
    %121 = vmatpush2.msra.mxu0 0.0
    %122 = vmatprep.subr.mxu0 0.0
    %123 = vmatpush2.msra.mxu0 0.0
    %124 = vmatprep.subr.mxu0 0.0
    %125 = vmatpush2.msra.mxu0 0.0
    %126 = vmatprep.subr.mxu0 0.0
    %127 = vmatpush2.msra.mxu0 0.0
    %128 = vmatprep.subr.mxu0 0.0
    %129 = vmatpush2.msra.mxu0 0.0
    %130 = vmatprep.subr.mxu0 0.0
    %131 = vmatpush2.msra.mxu0 0.0
    %132 = vmatprep.subr.mxu0 0.0
    %133 = vmatpush2.msra.mxu0 0.0
    %134 = vmatprep.subr.mxu0 0.0
    %135 = vmatpush2.msra.mxu0 0.0
    %136 = vmatprep.subr.mxu0 0.0
    %137 = vmatpush2.msra.mxu0 0.0
    %138 = vmatprep.subr.mxu0 0.0
    %139 = vmatpush2.msra.mxu0 0.0
    %140 = vmatprep.subr.mxu0 0.0
    %141 = vmatpush2.msra.mxu0 0.0
    %142 = vmatprep.subr.mxu0 0.0
    %143 = vmatpush2.msra.mxu0 0.0
    %144 = vmatprep.subr.mxu0 0.0
    %145 = vmatpush2.msra.mxu0 0.0
    %146 = vmatprep.subr.mxu0 0.0
    %147 = vmatpush2.msra.mxu0 0.0
    %148 = vmatprep.mubr.f32.mxu0 0.0
    %149 = vmatmul.mubr.f32.gmra.mxu0 %v74
    %v150 = vpop.f32.mrf.mxu0
    %v151 = vadd.f32 0.0, %v150
    %v152 = vpop.f32.mrf.mxu0
    %v153 = vadd.f32 0.0, %v152
    %154 = vdwg.mxu0
    %155 = vmatprep.subr.mxu0 0.0
    %156 = vmatpush1.msra.mxu0 0.0
    %157 = vmatprep.subr.mxu0 0.0
    %158 = vmatpush1.msra.mxu0 0.0
    %159 = vmatprep.subr.mxu0 0.0
    %160 = vmatpush1.msra.mxu0 0.0
    %161 = vmatprep.subr.mxu0 0.0
    %162 = vmatpush1.msra.mxu0 0.0
    %163 = vmatprep.subr.mxu0 0.0
    %164 = vmatpush1.msra.mxu0 0.0
    %165 = vmatprep.subr.mxu0 0.0
    %166 = vmatpush1.msra.mxu0 0.0
    %167 = vmatprep.subr.mxu0 0.0
    %168 = vmatpush1.msra.mxu0 0.0
    %169 = vmatprep.subr.mxu0 0.0
    %170 = vmatpush1.msra.mxu0 0.0
    %171 = vmatprep.subr.mxu0 0.0
    %172 = vmatpush1.msra.mxu0 0.0
    %173 = vmatprep.subr.mxu0 0.0
    %174 = vmatpush1.msra.mxu0 0.0
    %175 = vmatprep.subr.mxu0 0.0
    %176 = vmatpush1.msra.mxu0 0.0
    %177 = vmatprep.subr.mxu0 0.0
    %178 = vmatpush1.msra.mxu0 0.0
    %179 = vmatprep.subr.mxu0 0.0
    %180 = vmatpush1.msra.mxu0 0.0
    %181 = vmatprep.subr.mxu0 0.0
    %182 = vmatpush1.msra.mxu0 0.0
    %183 = vmatprep.subr.mxu0 0.0
    %184 = vmatpush1.msra.mxu0 0.0
    %185 = vmatprep.subr.mxu0 %v82
    %186 = vmatpush1.msra.mxu0 %v80
    %187 = vmatprep.subr.mxu0 0.0
    %188 = vmatpush2.msra.mxu0 0.0
    %189 = vmatprep.subr.mxu0 0.0
    %190 = vmatpush2.msra.mxu0 0.0
    %191 = vmatprep.subr.mxu0 0.0
    %192 = vmatpush2.msra.mxu0 0.0
    %193 = vmatprep.subr.mxu0 0.0
    %194 = vmatpush2.msra.mxu0 0.0
    %195 = vmatprep.subr.mxu0 0.0
    %196 = vmatpush2.msra.mxu0 0.0
    %197 = vmatprep.subr.mxu0 0.0
    %198 = vmatpush2.msra.mxu0 0.0
    %199 = vmatprep.subr.mxu0 0.0
    %200 = vmatpush2.msra.mxu0 0.0
    %201 = vmatprep.subr.mxu0 0.0
    %202 = vmatpush2.msra.mxu0 0.0
    %203 = vmatprep.subr.mxu0 0.0
    %204 = vmatpush2.msra.mxu0 0.0
    %205 = vmatprep.subr.mxu0 0.0
    %206 = vmatpush2.msra.mxu0 0.0
    %207 = vmatprep.subr.mxu0 0.0
    %208 = vmatpush2.msra.mxu0 0.0
    %209 = vmatprep.subr.mxu0 0.0
    %210 = vmatpush2.msra.mxu0 0.0
    %211 = vmatprep.subr.mxu0 0.0
    %212 = vmatpush2.msra.mxu0 0.0
    %213 = vmatprep.subr.mxu0 0.0
    %214 = vmatpush2.msra.mxu0 0.0
    %215 = vmatprep.subr.mxu0 0.0
    %216 = vmatpush2.msra.mxu0 0.0
    %217 = vmatprep.subr.mxu0 0.0
    %218 = vmatpush2.msra.mxu0 0.0
    %219 = vmatprep.mubr.f32.mxu0 0.0
    %220 = vmatmul.mubr.f32.gmra.mxu0 %v74
    %v221 = vpop.f32.mrf.mxu0
    %v222 = vadd.f32 0.0, %v221
    %v223 = vpop.f32.mrf.mxu0
    %v224 = vadd.f32 0.0, %v223
    %225 = vdwg.mxu0
    %227 = vset.pattern.permute.xlu0 0
    %228 = vperm.xlu0 %227, %v29
    %v229 = vpop.permute.xlu0 %228
    %v231 = vadd.f32 %v46, %v229
    %v232 = vadd.f32 %v53, %v229
    %v233 = vadd.f32 %v60, %v229
    %v234 = vadd.f32 %v67, %v229
    %v235 = vadd.f32 %v231, %v151
    %v236 = vadd.f32 %v232, %v153
    %v237 = vadd.f32 %v233, %v222
    %v238 = vadd.f32 %v234, %v224
    %v239 = vrot.slane %v235, 4
    %v240 = vmin.f32 %v235, %v239
    %v241 = vrot.slane %v240, 2
    %v242 = vmin.f32 %v240, %v241
    %v243 = vrot.slane %v242, 1
    %v244 = vmin.f32 %v242, %v243
    %v245 = vrot.slane %v236, 4
    %v246 = vmin.f32 %v236, %v245
    %v247 = vrot.slane %v246, 2
    %v248 = vmin.f32 %v246, %v247
    %v249 = vrot.slane %v248, 1
    %v250 = vmin.f32 %v248, %v249
    %v251 = vrot.slane %v237, 4
    %v252 = vmin.f32 %v237, %v251
    %v253 = vrot.slane %v252, 2
    %v254 = vmin.f32 %v252, %v253
    %v255 = vrot.slane %v254, 1
    %v256 = vmin.f32 %v254, %v255
    %v257 = vrot.slane %v238, 4
    %v258 = vmin.f32 %v238, %v257
    %v259 = vrot.slane %v258, 2
    %v260 = vmin.f32 %v258, %v259
    %v261 = vrot.slane %v260, 1
    %v262 = vmin.f32 %v260, %v261
    %vm263 = vcmp.eq.f32.partialorder %v235, %v244
    %vm264 = vcmp.eq.f32.partialorder %v236, %v250
    %vm265 = vcmp.eq.f32.partialorder %v237, %v256
    %vm266 = vcmp.eq.f32.partialorder %v238, %v262
    %268 = vset.pattern.permute.xlu0 0
    %269 = vperm.xlu0 %268, %v30
    %v270 = vpop.permute.xlu0 %269
    %v272 = vsel %vm263, %v270, 8.0
    %v273 = vsel %vm264, %v270, 8.0
    %v274 = vsel %vm265, %v270, 8.0
    %v275 = vsel %vm266, %v270, 8.0
    %v276 = vrot.slane %v272, 4
    %v277 = vmin.f32 %v272, %v276
    %v278 = vrot.slane %v277, 2
    %v279 = vmin.f32 %v277, %v278
    %v280 = vrot.slane %v279, 1
    %v281 = vmin.f32 %v279, %v280
    %v282 = vrot.slane %v273, 4
    %v283 = vmin.f32 %v273, %v282
    %v284 = vrot.slane %v283, 2
    %v285 = vmin.f32 %v283, %v284
    %v286 = vrot.slane %v285, 1
    %v287 = vmin.f32 %v285, %v286
    %v288 = vrot.slane %v274, 4
    %v289 = vmin.f32 %v274, %v288
    %v290 = vrot.slane %v289, 2
    %v291 = vmin.f32 %v289, %v290
    %v292 = vrot.slane %v291, 1
    %v293 = vmin.f32 %v291, %v292
    %v294 = vrot.slane %v275, 4
    %v295 = vmin.f32 %v275, %v294
    %v296 = vrot.slane %v295, 2
    %v297 = vmin.f32 %v295, %v296
    %v298 = vrot.slane %v297, 1
    %v299 = vmin.f32 %v297, %v298
    %v300 = vcvt.f32.s32.to.zero.pseudo %v281
    %v301 = vcvt.f32.s32.to.zero.pseudo %v287
    %v302 = vcvt.f32.s32.to.zero.pseudo %v293
    %v303 = vcvt.f32.s32.to.zero.pseudo %v299
    %v304 = vcombine.low %v300, %v301
    %v305 = vcombine.low %v302, %v303
    %v307 = vunpack.c.l.s4 1966171168
    %v308 = vunpack.c.0.s8 %v307
    %v309 = vlaneseq
    %v310 = vshrl.u32 %v309, 7
    %v311 = vsub.s32 %v308, %v310
    %v312 = vrot.slane %v304, %v311
    %v314 = vunpack.c.l.s4 1966171168
    %v315 = vunpack.c.0.s8 %v314
    %v316 = vlaneseq
    %v317 = vshrl.u32 %v316, 7
    %v318 = vsub.s32 %v315, %v317
    %v319 = vrot.slane %v305, %v318
    %v320 = vcombine.low %v312, %v319
    %v322 = vunpack.c.l.s4 1966171168
    %v323 = vunpack.c.0.s8 %v322
    %v324 = vlaneseq
    %v325 = vshrl.u32 %v324, 7
    %v326 = vsub.s32 %v323, %v325
    %v327 = vrot.slane %v320, %v326
    %v328 = vlaneseq
    %vm329 = vcmp.ge.s32.totalorder %v328, 0
    %vm330 = vcmp.lt.s32.totalorder %v328, 512
    %vm331 = vmand %vm329, %vm330
    %332 = vst.msk [vmem:[#allocation2] sm:$0xf] %vm331, %v327
    %vm333 = vcmp.eq.f32.partialorder %v270, %v281
    %vm334 = vcmp.eq.f32.partialorder %v270, %v287
    %vm335 = vcmp.eq.f32.partialorder %v270, %v293
    %vm336 = vcmp.eq.f32.partialorder %v270, %v299
    %v337 = vsel %vm333, 1, 0
    %v338 = vsel %vm334, 1, 0
    %v339 = vsel %vm335, 1, 0
    %v340 = vsel %vm336, 1, 0
    %v341 = vcvt.s32.f32 %v337
    %v342 = vcvt.s32.f32 %v338
    %v343 = vcvt.s32.f32 %v339
    %v344 = vcvt.s32.f32 %v340
    %vm345 = vcmask 64512
    %v347 = vsel %vm345, %v27, 0
    %349 = vmatprep.subr.mxu0 0.0
    %350 = vmatpush1.msra.mxu0 0.0
    %351 = vmatprep.subr.mxu0 0.0
    %352 = vmatpush1.msra.mxu0 0.0
    %353 = vmatprep.subr.mxu0 0.0
    %354 = vmatpush1.msra.mxu0 0.0
    %355 = vmatprep.subr.mxu0 0.0
    %356 = vmatpush1.msra.mxu0 0.0
    %357 = vmatprep.subr.mxu0 0.0
    %358 = vmatpush1.msra.mxu0 0.0
    %359 = vmatprep.subr.mxu0 0.0
    %360 = vmatpush1.msra.mxu0 0.0
    %361 = vmatprep.subr.mxu0 0.0
    %362 = vmatpush1.msra.mxu0 0.0
    %363 = vmatprep.subr.mxu0 0.0
    %364 = vmatpush1.msra.mxu0 0.0
    %365 = vmatprep.subr.mxu0 0.0
    %366 = vmatpush1.msra.mxu0 0.0
    %367 = vmatprep.subr.mxu0 0.0
    %368 = vmatpush1.msra.mxu0 0.0
    %369 = vmatprep.subr.mxu0 0.0
    %370 = vmatpush1.msra.mxu0 0.0
    %371 = vmatprep.subr.mxu0 0.0
    %372 = vmatpush1.msra.mxu0 0.0
    %373 = vmatprep.subr.mxu0 0.0
    %374 = vmatpush1.msra.mxu0 0.0
    %375 = vmatprep.subr.mxu0 0.0
    %376 = vmatpush1.msra.mxu0 0.0
    %377 = vmatprep.subr.mxu0 0.0
    %378 = vmatpush1.msra.mxu0 0.0
    %379 = vmatprep.subr.mxu0 %v342
    %380 = vmatpush1.msra.mxu0 %v341
    %381 = vmatprep.subr.mxu0 0.0
    %382 = vmatpush2.msra.mxu0 0.0
    %383 = vmatprep.subr.mxu0 0.0
    %384 = vmatpush2.msra.mxu0 0.0
    %385 = vmatprep.subr.mxu0 0.0
    %386 = vmatpush2.msra.mxu0 0.0
    %387 = vmatprep.subr.mxu0 0.0
    %388 = vmatpush2.msra.mxu0 0.0
    %389 = vmatprep.subr.mxu0 0.0
    %390 = vmatpush2.msra.mxu0 0.0
    %391 = vmatprep.subr.mxu0 0.0
    %392 = vmatpush2.msra.mxu0 0.0
    %393 = vmatprep.subr.mxu0 0.0
    %394 = vmatpush2.msra.mxu0 0.0
    %395 = vmatprep.subr.mxu0 0.0
    %396 = vmatpush2.msra.mxu0 0.0
    %397 = vmatprep.subr.mxu0 0.0
    %398 = vmatpush2.msra.mxu0 0.0
    %399 = vmatprep.subr.mxu0 0.0
    %400 = vmatpush2.msra.mxu0 0.0
    %401 = vmatprep.subr.mxu0 0.0
    %402 = vmatpush2.msra.mxu0 0.0
    %403 = vmatprep.subr.mxu0 0.0
    %404 = vmatpush2.msra.mxu0 0.0
    %405 = vmatprep.subr.mxu0 0.0
    %406 = vmatpush2.msra.mxu0 0.0
    %407 = vmatprep.subr.mxu0 0.0
    %408 = vmatpush2.msra.mxu0 0.0
    %409 = vmatprep.subr.mxu0 0.0
    %410 = vmatpush2.msra.mxu0 0.0
    %411 = vmatprep.subr.mxu0 0.0
    %412 = vmatpush2.msra.mxu0 0.0
    %413 = vmatprep.mubr.f32.mxu0 0.0
    %414 = vmatmul.mubr.f32.gmra.mxu0 %v347
    %v415 = vpop.f32.mrf.mxu0
    %v416 = vadd.f32 0.0, %v415
    %v417 = vpop.f32.mrf.mxu0
    %v418 = vadd.f32 0.0, %v417
    %419 = vdwg.mxu0
    %420 = vmatprep.subr.mxu0 0.0
    %421 = vmatpush1.msra.mxu0 0.0
    %422 = vmatprep.subr.mxu0 0.0
    %423 = vmatpush1.msra.mxu0 0.0
    %424 = vmatprep.subr.mxu0 0.0
    %425 = vmatpush1.msra.mxu0 0.0
    %426 = vmatprep.subr.mxu0 0.0
    %427 = vmatpush1.msra.mxu0 0.0
    %428 = vmatprep.subr.mxu0 0.0
    %429 = vmatpush1.msra.mxu0 0.0
    %430 = vmatprep.subr.mxu0 0.0
    %431 = vmatpush1.msra.mxu0 0.0
    %432 = vmatprep.subr.mxu0 0.0
    %433 = vmatpush1.msra.mxu0 0.0
    %434 = vmatprep.subr.mxu0 0.0
    %435 = vmatpush1.msra.mxu0 0.0
    %436 = vmatprep.subr.mxu0 0.0
    %437 = vmatpush1.msra.mxu0 0.0
    %438 = vmatprep.subr.mxu0 0.0
    %439 = vmatpush1.msra.mxu0 0.0
    %440 = vmatprep.subr.mxu0 0.0
    %441 = vmatpush1.msra.mxu0 0.0
    %442 = vmatprep.subr.mxu0 0.0
    %443 = vmatpush1.msra.mxu0 0.0
    %444 = vmatprep.subr.mxu0 0.0
    %445 = vmatpush1.msra.mxu0 0.0
    %446 = vmatprep.subr.mxu0 0.0
    %447 = vmatpush1.msra.mxu0 0.0
    %448 = vmatprep.subr.mxu0 0.0
    %449 = vmatpush1.msra.mxu0 0.0
    %450 = vmatprep.subr.mxu0 %v344
    %451 = vmatpush1.msra.mxu0 %v343
    %452 = vmatprep.subr.mxu0 0.0
    %453 = vmatpush2.msra.mxu0 0.0
    %454 = vmatprep.subr.mxu0 0.0
    %455 = vmatpush2.msra.mxu0 0.0
    %456 = vmatprep.subr.mxu0 0.0
    %457 = vmatpush2.msra.mxu0 0.0
    %458 = vmatprep.subr.mxu0 0.0
    %459 = vmatpush2.msra.mxu0 0.0
    %460 = vmatprep.subr.mxu0 0.0
    %461 = vmatpush2.msra.mxu0 0.0
    %462 = vmatprep.subr.mxu0 0.0
    %463 = vmatpush2.msra.mxu0 0.0
    %464 = vmatprep.subr.mxu0 0.0
    %465 = vmatpush2.msra.mxu0 0.0
    %466 = vmatprep.subr.mxu0 0.0
    %467 = vmatpush2.msra.mxu0 0.0
    %468 = vmatprep.subr.mxu0 0.0
    %469 = vmatpush2.msra.mxu0 0.0
    %470 = vmatprep.subr.mxu0 0.0
    %471 = vmatpush2.msra.mxu0 0.0
    %472 = vmatprep.subr.mxu0 0.0
    %473 = vmatpush2.msra.mxu0 0.0
    %474 = vmatprep.subr.mxu0 0.0
    %475 = vmatpush2.msra.mxu0 0.0
    %476 = vmatprep.subr.mxu0 0.0
    %477 = vmatpush2.msra.mxu0 0.0
    %478 = vmatprep.subr.mxu0 0.0
    %479 = vmatpush2.msra.mxu0 0.0
    %480 = vmatprep.subr.mxu0 0.0
    %481 = vmatpush2.msra.mxu0 0.0
    %482 = vmatprep.subr.mxu0 0.0
    %483 = vmatpush2.msra.mxu0 0.0
    %484 = vmatprep.mubr.f32.mxu0 0.0
    %485 = vmatmul.mubr.f32.gmra.mxu0 %v347
    %v486 = vpop.f32.mrf.mxu0
    %v487 = vadd.f32 0.0, %v486
    %v488 = vpop.f32.mrf.mxu0
    %v489 = vadd.f32 0.0, %v488
    %490 = vdwg.mxu0
    %v495 = vcombine.low %v416, %v418
    %v496 = vcombine.low %v487, %v489
    %499 = vst [vmem:[%s5] sm:$0xff] %v495
    %500 = vst [vmem:[%s5 + $0x8] sm:$0xff] %v496
    %v501 = vadd.f32 %v341, %v342
    %v502 = vadd.f32 %v501, %v343
    %v503 = vadd.f32 %v502, %v344
    %504 = vadd.xlane.f32.xlu0 %v503
    %v505 = vpop.xlane.xlu0 %504
    %vm506 = vcmask 7168
    %507 = vst.msk [vmem:[%s7] sm:$0xff] %vm506, %v505
    %v510 = vsub.f32 %v416, %v25
    %v511 = vsub.f32 %v418, %v70
    %v512 = vsub.f32 %v487, %v26
    %v513 = vsub.f32 %v489, %v71
    %v514 = vmul.f32 %v510, %v510
    %v515 = vmul.f32 %v511, %v511
    %v516 = vmul.f32 %v512, %v512
    %v517 = vmul.f32 %v513, %v513
    %v518 = vsel %vm39, %v514, 0.0
    %v519 = vrot.slane %v518, 4
    %v520 = vadd.f32 %v518, %v519
    %v521 = vrot.slane %v520, 2
    %v522 = vadd.f32 %v520, %v521
    %v523 = vrot.slane %v522, 1
    %v524 = vadd.f32 %v522, %v523
    %v525 = vsel %vm39, %v515, 0.0
    %v526 = vrot.slane %v525, 4
    %v527 = vadd.f32 %v525, %v526
    %v528 = vrot.slane %v527, 2
    %v529 = vadd.f32 %v527, %v528
    %v530 = vrot.slane %v529, 1
    %v531 = vadd.f32 %v529, %v530
    %v532 = vsel %vm39, %v516, 0.0
    %v533 = vrot.slane %v532, 4
    %v534 = vadd.f32 %v532, %v533
    %v535 = vrot.slane %v534, 2
    %v536 = vadd.f32 %v534, %v535
    %v537 = vrot.slane %v536, 1
    %v538 = vadd.f32 %v536, %v537
    %v539 = vsel %vm39, %v517, 0.0
    %v540 = vrot.slane %v539, 4
    %v541 = vadd.f32 %v539, %v540
    %v542 = vrot.slane %v541, 2
    %v543 = vadd.f32 %v541, %v542
    %v544 = vrot.slane %v543, 1
    %v545 = vadd.f32 %v543, %v544
    %v546 = vadd.f32 %v524, %v531
    %v547 = vadd.f32 %v546, %v538
    %v548 = vadd.f32 %v547, %v545
    %549 = vadd.xlane.f32.xlu0 %v548
    %v550 = vpop.xlane.xlu0 %549
    %551 = vst [vmem:[%s8] sm:$0x1] %v550
    // Predicated region
    $region22: #{vector_quantizer_forward.1} parent=1 // pred_check
      _
    $region23: #{vector_quantizer_forward.1} parent=1 // pred_check_branch
      %553 = sbr.rel (0) target = $region25
    $region24: #{vector_quantizer_forward.1} parent=1 // pred_region
      _
    $region25: #{vector_quantizer_forward.1} parent=1 // pred_fallthru
      _
    // Predicated region
    $region26: #{vector_quantizer_forward.1} parent=1 // pred_check
      _
    $region27: #{vector_quantizer_forward.1} parent=1 // pred_check_branch
      %555 = sbr.rel (0) target = $region29
    $region28: #{vector_quantizer_forward.1} parent=1 // pred_region
      %s557 = ssub.s32 64, 64
      %558 = vsyncadd [#allocation3], %s557
      %s560 = sshll.u32 [#allocation2], 4
      %s561 = int_to_ptr.vmem [resolvable:$true] %s560
      %563 = dma.vmem_to_hbm [thread:$0]  %s561, 64, %s6, [#allocation3]
    $region29: #{vector_quantizer_forward.1} parent=1 // pred_fallthru
      _
    // Predicated region
    $region30: #{vector_quantizer_forward.1} parent=1 // pred_check
      _
    $region31: #{vector_quantizer_forward.1} parent=1 // pred_check_branch
      %565 = sbr.rel (0) target = $region33
    $region32: #{vector_quantizer_forward.1} parent=1 // pred_region
      _
    $region33: #{vector_quantizer_forward.1} parent=1 // pred_fallthru
      _
    // Predicated region
    $region34: #{vector_quantizer_forward.1} parent=1 // pred_check
      _
    $region35: #{vector_quantizer_forward.1} parent=1 // pred_check_branch
      %567 = sbr.rel (0) target = $region37
    $region36: #{vector_quantizer_forward.1} parent=1 // pred_region
      _
    $region37: #{vector_quantizer_forward.1} parent=1 // pred_fallthru
      _
    // Predicated region
    $region38: #{vector_quantizer_forward.1} parent=1 // pred_check
      _
    $region39: #{vector_quantizer_forward.1} parent=1 // pred_check_branch
      %569 = sbr.rel (0) target = $region41
    $region40: #{vector_quantizer_forward.1} parent=1 // pred_region
      _
    $region41: #{vector_quantizer_forward.1} parent=1 // pred_fallthru
      _
    // Predicated region
    $region42: #{vector_quantizer_forward.1} parent=1 // pred_check
      _
    $region43: #{vector_quantizer_forward.1} parent=1 // pred_check_branch
      %571 = sbr.rel (0) target = $region45
    $region44: #{vector_quantizer_forward.1} parent=1 // pred_region
      %572 = dma.done [#allocation3], 64
    $region45: #{vector_quantizer_forward.1} parent=1 // pred_fallthru
      _
    // Predicated region
    $region46: #{vector_quantizer_forward.1} parent=1 // pred_check
      _
    $region47: #{vector_quantizer_forward.1} parent=1 // pred_check_branch
      %574 = sbr.rel (0) target = $region49
    $region48: #{vector_quantizer_forward.1} parent=1 // pred_region
      _
    $region49: #{vector_quantizer_forward.1} parent=1 // pred_fallthru
      _
    // Predicated region
    $region50: #{vector_quantizer_forward.1} parent=1 // pred_check
      _
    $region51: #{vector_quantizer_forward.1} parent=1 // pred_check_branch
      %576 = sbr.rel (0) target = $region53
    $region52: #{vector_quantizer_forward.1} parent=1 // pred_region
      _
    $region53: #{vector_quantizer_forward.1} parent=1 // pred_fallthru
      _
    %577 = vsyncpa [#allocation3], 1

</llo_original>
